<compile_context>
chip_gen: v5e
topology: v5e:2x2
jax: 0.10.0
libtpu: 0.0.40
codegen_flags: <defaults>
</compile_context>

<pallas_src>
import numpy as np
import jax
import jax.numpy as jnp
from jax.experimental import pallas as pl
from jax.experimental.pallas import tpu as pltpu


def _make_g_block_kernel(N, L, C_in, C_out, rows_per_tile, eps):
    R = rows_per_tile
    inv_cnt = 1.0 / float(2 * N * L)      # BN count per channel = N * L_out = 2*N*L
    pow2 = (L & (L - 1)) == 0

    def kernel(x_ref, w_ref, g_ref, b_ref, o_ref, sum_ref, sq_ref):
        # x_ref: (R, C_in) bf16          w_ref: (3*C_in, 2*C_out) bf16
        # g_ref/b_ref: (1, C_out) f32    o_ref: (R, 2*C_out) f32
        # sum_ref/sq_ref: (1, 2*C_out) f32 VMEM scratch (persist across the grid)
        phase = pl.program_id(0)          # 0: accumulate BN stats, 1: normalize+write
        tile = pl.program_id(1)

        # ---- ConvTranspose1d as ONE MXU matmul over an in-kernel im2col ------
        # Rows are (n, m) flattened; each tile holds whole batch elements, so
        # the sublane rolls only ever wrap onto rows that are masked anyway.
        x = x_ref[...].astype(jnp.float32)                       # (R, C_in)
        row = jax.lax.broadcasted_iota(jnp.int32, (R, 1), 0)
        pos = (row & (L - 1)) if pow2 else (row % L)             # position within batch elem
        x_prev = jnp.where(pos == 0, 0.0, pltpu.roll(x, shift=1, axis=0))
        x_next = jnp.where(pos == L - 1, 0.0, pltpu.roll(x, shift=R - 1, axis=0))
        x_cat = jnp.concatenate([x_prev, x, x_next], axis=1)     # (R, 3*C_in) f32

        # Single bf16 MXU push, f32 accumulation (review: drop Precision.HIGHEST).
        y = jnp.dot(x_cat.astype(jnp.bfloat16), w_ref[...],
                    preferred_element_type=jnp.float32)          # (R, 2*C_out) = [even|odd]

        @pl.when((phase == 0) & (tile == 0))
        def _init():
            sum_ref[...] = jnp.zeros_like(sum_ref)
            sq_ref[...] = jnp.zeros_like(sq_ref)

        @pl.when(phase == 0)
        def _accumulate():
            # One-pass BN stats: var = E[y^2] - E[y]^2 (no second centered pass).
            sum_ref[...] += jnp.sum(y, axis=0, keepdims=True)
            sq_ref[...] += jnp.sum(y * y, axis=0, keepdims=True)

        @pl.when(phase == 1)
        def _normalize():
            # Columns c and c + C_out are the SAME BatchNorm channel (even/odd
            # output positions): fold the halves, then duplicate scale/shift so
            # the apply step is one full-width (lane-dense) fused multiply-add.
            s = sum_ref[...]
            q = sq_ref[...]
            s_c = s[:, :C_out] + s[:, C_out:]                    # (1, C_out)
            q_c = q[:, :C_out] + q[:, C_out:]
            mean = s_c * inv_cnt
            var = q_c * inv_cnt - mean * mean                    # biased, as BN normalizes
            inv = jax.lax.rsqrt(var + eps)
            scale_h = g_ref[...] * inv                           # (1, C_out)
            shift_h = b_ref[...] - mean * scale_h
            scale = jnp.concatenate([scale_h, scale_h], axis=1)  # (1, 2*C_out)
            shift = jnp.concatenate([shift_h, shift_h], axis=1)
            o_ref[...] = jnp.maximum(y * scale + shift, 0.0)

    return kernel


def g_block_forward_nlc(x_nlc, w, gamma, beta, *, eps=1e-5, block_rows=1024):
    """Channels-last fast path (no layout transposes).

    x_nlc: (N, L, C_in); w: (C_in, C_out, 4) PyTorch ConvTranspose1d layout;
    gamma, beta: (C_out,).  Returns (N, 2*L, C_out) float32.
    """
    N, L, C_in = x_nlc.shape
    C_out = w.shape[1]

    # Activations travel as bf16 (half the HBM traffic); matmul accumulates f32.
    x2 = x_nlc.reshape(N * L, C_in).astype(jnp.bfloat16)

    # Pack the 4 taps into one (3*C_in, 2*C_out) matrix so x_cat @ W_cat gives
    # [y_even | y_odd] in a single matmul:
    #   rows 0..C_in-1   multiply x[m-1]  -> [W3 | 0 ]
    #   rows C_in..2C_in multiply x[m]    -> [W1 | W2]
    #   rows 2C_in..     multiply x[m+1]  -> [0  | W0]
    z = jnp.zeros((C_in, C_out), w.dtype)
    w_cat = jnp.concatenate([
        jnp.concatenate([w[:, :, 3], z], axis=1),
        jnp.concatenate([w[:, :, 1], w[:, :, 2]], axis=1),
        jnp.concatenate([z, w[:, :, 0]], axis=1),
    ], axis=0).astype(jnp.bfloat16)

    g2 = gamma.reshape(1, C_out).astype(jnp.float32)
    b2 = beta.reshape(1, C_out).astype(jnp.float32)

    # Row tiles hold whole batch elements so the in-kernel neighbour rolls never
    # need a halo from another tile (the wrapped rows are the masked ones).
    bt = max(1, min(N, block_rows // max(L, 1)))
    while N % bt:
        bt -= 1
    if (bt * L) % 16 != 0:        # keep the bf16 sublane tiling happy
        bt = N                    # block == full array -> no alignment constraint
    R = bt * L
    T = N // bt

    kernel = _make_g_block_kernel(N, L, C_in, C_out, R, eps)
    out2 = pl.pallas_call(
        kernel,
        grid=(2, T),  # (phase, row tile): phase 0 = BN stats, phase 1 = write
        in_specs=[
            pl.BlockSpec((R, C_in), lambda p, t: (t, 0)),
            pl.BlockSpec((3 * C_in, 2 * C_out), lambda p, t: (0, 0)),
            pl.BlockSpec((1, C_out), lambda p, t: (0, 0)),
            pl.BlockSpec((1, C_out), lambda p, t: (0, 0)),
        ],
        # p*t pins the output block index during phase 0 so the untouched output
        # buffer is never flushed to HBM until phase 1 actually writes it.
        out_specs=pl.BlockSpec((R, 2 * C_out), lambda p, t: (p * t, 0)),
        out_shape=jax.ShapeDtypeStruct((N * L, 2 * C_out), jnp.float32),
        scratch_shapes=[
            pltpu.VMEM((1, 2 * C_out), jnp.float32),   # per-channel sum
            pltpu.VMEM((1, 2 * C_out), jnp.float32),   # per-channel sum of squares
        ],
        compiler_params=pltpu.CompilerParams(
            # Both axes sequential: phase 1 depends on stats accumulated across
            # every tile of phase 0.
            # TODO(synk): on v7x, shard the tile axis across the two TensorCores
            # and combine per-core partial sums (CMEM / second reduction pass).
            dimension_semantics=("arbitrary", "arbitrary"),
            vmem_limit_bytes=48 * 1024 * 1024,
        ),
    )(x2, w_cat, g2, b2)

    # Even/odd interleave is a free reshape in channels-last layout.
    return out2.reshape(N, 2 * L, C_out)


def g_block_forward(x, w, gamma, beta, eps=1e-5, block_rows=1024):
    """PyTorch-layout adapter: x (N, C_in, L) -> (N, C_out, 2*L).

    The transposes here only exist to match PyTorch's NCL convention at the
    boundary; chained _Gdiv blocks should call g_block_forward_nlc and stay
    channels-last (review item: avoid per-block HBM transpose passes).
    """
    x_nlc = jnp.transpose(x, (0, 2, 1))
    y_nlc = g_block_forward_nlc(x_nlc, w, gamma, beta, eps=eps, block_rows=block_rows)
    return jnp.transpose(y_nlc, (0, 2, 1))


def _reference_forward(x, w, gamma, beta, eps=1e-5):
    """Pure-numpy reference: ConvTranspose1d(4,2,1,bias=False) + BN(train) + ReLU."""
    xn, wn = np.asarray(x, np.float64), np.asarray(w, np.float64)
    N, C_in, L = xn.shape
    C_out = wn.shape[1]
    K, stride, pad = 4, 2, 1
    Lout = (L - 1) * stride - 2 * pad + K
    y = np.zeros((N, C_out, Lout), np.float64)
    for n in range(N):
        for l in range(L):
            for k in range(K):
                t = l * stride - pad + k
                if 0 <= t < Lout:
                    y[n, :, t] += xn[n, :, l] @ wn[:, :, k]
    mean = y.mean(axis=(0, 2), keepdims=True)
    var = y.var(axis=(0, 2), keepdims=True)   # biased, matches BN normalization
    yhat = (y - mean) / np.sqrt(var + eps)
    out = yhat * np.asarray(gamma, np.float64).reshape(1, -1, 1) \
        + np.asarray(beta, np.float64).reshape(1, -1, 1)
    return np.maximum(out, 0.0).astype(np.float32)


if __name__ == "__main__":
    # One _Gdiv "main6" block of _G3 with num_classes=4:
    #   ConvTranspose1d(256//8 + 4, 256//8, 4, 2, 1, bias=False)
    #   -> BatchNorm1d(256//8) -> ReLU
    num_classes = 4
    C_out = 256 // 8                  # 32
    C_in = 256 // 8 + num_classes     # 36 (ConvConcatLayer appends label channels)
    N, L = 4, 64                      # small demo length (real block sees L=256)

    key = jax.random.PRNGKey(0)
    kx, kw, kg, kb = jax.random.split(key, 4)
    x = jax.random.normal(kx, (N, C_in, L), dtype=jnp.float32)
    w = 0.2 * jax.random.normal(kw, (C_in, C_out, 4), dtype=jnp.float32)  # (C_in, C_out, K)
    gamma = 1.0 + 0.1 * jax.random.normal(kg, (C_out,), dtype=jnp.float32)
    beta = 0.1 * jax.random.normal(kb, (C_out,), dtype=jnp.float32)

    fwd = jax.jit(g_block_forward, static_argnames=("eps", "block_rows"))
    # block_rows=128 -> 2 row tiles, exercising the cross-tile two-phase BN path.
    out = jax.block_until_ready(fwd(x, w, gamma, beta, eps=1e-5, block_rows=128))

    ref = _reference_forward(x, w, gamma, beta)
    assert out.shape == (N, C_out, 2 * L), out.shape
    # Tolerance reflects the deliberate bf16 MXU operand rounding (review item:
    # drop Precision.HIGHEST); accumulation stays in f32.
    np.testing.assert_allclose(np.asarray(out), ref, rtol=2e-2, atol=2e-2)
    print("KERNEL_OK")
</pallas_src>

<mosaic_0001>
module attributes {stable_mosaic.version = 11 : i64} {
  func.func @kernel(%arg0: i32, %arg1: i32, %arg2: memref<128x36xbf16, #tpu.memory_space<vmem>>, %arg3: memref<108x64xbf16, #tpu.memory_space<vmem>>, %arg4: memref<1x32xf32, #tpu.memory_space<vmem>>, %arg5: memref<1x32xf32, #tpu.memory_space<vmem>>, %arg6: memref<128x64xf32, #tpu.memory_space<vmem>>, %arg7: memref<1x64xf32, #tpu.memory_space<vmem>>, %arg8: memref<1x64xf32, #tpu.memory_space<vmem>>) attributes {dimension_semantics = [#tpu.dimension_semantics<arbitrary>, #tpu.dimension_semantics<arbitrary>], iteration_bounds = array<i64: 2, 2>, scalar_prefetch = 0 : i64, scratch_operands = 2 : i64, tpu.core_type = #tpu.core_type<tc>, window_params = [{transform_indices = @transform_0, window_bounds = array<i64: 128, 36>}, {pipeline_mode = #tpu.pipeline_mode<synchronous>, transform_indices = @transform_1, window_bounds = array<i64: 108, 64>}, {pipeline_mode = #tpu.pipeline_mode<synchronous>, transform_indices = @transform_2, window_bounds = array<i64: 1, 32>}, {pipeline_mode = #tpu.pipeline_mode<synchronous>, transform_indices = @transform_3, window_bounds = array<i64: 1, 32>}, {transform_indices = @transform_4, window_bounds = array<i64: 128, 64>}]} {
    %c0 = arith.constant 0 : index
    %c0_0 = arith.constant 0 : index
    %0 = vector.load %arg2[%c0, %c0_0] : memref<128x36xbf16, #tpu.memory_space<vmem>>, vector<128x36xbf16>
    %1 = arith.extf %0 : vector<128x36xbf16> to vector<128x36xf32>
    %2 = tpu.iota {dimensions = array<i32: 0>} : vector<128x1xi32>
    %c63_i32 = arith.constant 63 : i32
    %3 = vector.broadcast %c63_i32 : i32 to vector<128x1xi32>
    %4 = arith.andi %2, %3 : vector<128x1xi32>
    %c0_i32 = arith.constant 0 : i32
    %5 = vector.broadcast %c0_i32 : i32 to vector<128x1xi32>
    %6 = arith.cmpi eq, %4, %5 : vector<128x1xi32>
    %c1_i32 = arith.constant 1 : i32
    %7 = tpu.dynamic_rotate %1 by %c1_i32 dim 0 : vector<128x36xf32>, i32 -> vector<128x36xf32>
    %cst = arith.constant 0.000000e+00 : f32
    %8 = vector.shape_cast %6 : vector<128x1xi1> to vector<128x1xi1>
    %9 = vector.broadcast %8 : vector<128x1xi1> to vector<128x36xi1>
    %10 = vector.broadcast %cst : f32 to vector<128x36xf32>
    %11 = arith.select %9, %10, %7 : vector<128x36xi1>, vector<128x36xf32>
    %c63_i32_1 = arith.constant 63 : i32
    %12 = vector.broadcast %c63_i32_1 : i32 to vector<128x1xi32>
    %13 = arith.cmpi eq, %4, %12 : vector<128x1xi32>
    %c127_i32 = arith.constant 127 : i32
    %14 = tpu.dynamic_rotate %1 by %c127_i32 dim 0 : vector<128x36xf32>, i32 -> vector<128x36xf32>
    %cst_2 = arith.constant 0.000000e+00 : f32
    %15 = vector.shape_cast %13 : vector<128x1xi1> to vector<128x1xi1>
    %16 = vector.broadcast %15 : vector<128x1xi1> to vector<128x36xi1>
    %17 = vector.broadcast %cst_2 : f32 to vector<128x36xf32>
    %18 = arith.select %16, %17, %14 : vector<128x36xi1>, vector<128x36xf32>
    %19 = tpu.concatenate %11, %1, %18 in 1 : vector<128x36xf32>, vector<128x36xf32>, vector<128x36xf32> -> vector<128x108xf32>
    %20 = arith.truncf %19 : vector<128x108xf32> to vector<128x108xbf16>
    %c0_3 = arith.constant 0 : index
    %c0_4 = arith.constant 0 : index
    %21 = vector.load %arg3[%c0_3, %c0_4] : memref<108x64xbf16, #tpu.memory_space<vmem>>, vector<108x64xbf16>
    %cst_5 = arith.constant dense<0.000000e+00> : vector<128x64xf32>
    %22 = tpu.matmul %20, %21, %cst_5 {dimension_numbers = #tpu.dot_dimension_numbers<[1], [0], [0], [1], [0, 0, 1, 1], [], []>} : vector<128x108xbf16>, vector<108x64xbf16>, vector<128x64xf32> -> vector<128x64xf32>
    %c0_i32_6 = arith.constant 0 : i32
    %23 = arith.cmpi eq, %arg0, %c0_i32_6 : i32
    %c0_i32_7 = arith.constant 0 : i32
    %24 = arith.cmpi eq, %arg1, %c0_i32_7 : i32
    %25 = arith.andi %23, %24 : i1
    %26 = arith.extui %25 : i1 to i32
    %c0_i32_8 = arith.constant 0 : i32
    %27 = arith.cmpi ne, %26, %c0_i32_8 : i32
    scf.if %27 {
      %cst_13 = arith.constant 0.000000e+00 : f32
      %34 = vector.broadcast %cst_13 : f32 to vector<1x64xf32>
      %c0_14 = arith.constant 0 : index
      %c0_15 = arith.constant 0 : index
      %35 = vector.load %arg7[%c0_14, %c0_15] : memref<1x64xf32, #tpu.memory_space<vmem>>, vector<1x64xf32>
      tpu.vector_store %arg7[%c0_14, %c0_15], %34 {strides = array<i32>} : memref<1x64xf32, #tpu.memory_space<vmem>>, vector<1x64xf32>,
      %cst_16 = arith.constant 0.000000e+00 : f32
      %36 = vector.broadcast %cst_16 : f32 to vector<1x64xf32>
      %c0_17 = arith.constant 0 : index
      %c0_18 = arith.constant 0 : index
      %37 = vector.load %arg8[%c0_17, %c0_18] : memref<1x64xf32, #tpu.memory_space<vmem>>, vector<1x64xf32>
      tpu.vector_store %arg8[%c0_17, %c0_18], %36 {strides = array<i32>} : memref<1x64xf32, #tpu.memory_space<vmem>>, vector<1x64xf32>,
    } else {
    }
    %c0_i32_9 = arith.constant 0 : i32
    %28 = arith.cmpi eq, %arg0, %c0_i32_9 : i32
    %29 = arith.extui %28 : i1 to i32
    %c0_i32_10 = arith.constant 0 : i32
    %30 = arith.cmpi ne, %29, %c0_i32_10 : i32
    scf.if %30 {
      %c0_13 = arith.constant 0 : index
      %c0_14 = arith.constant 0 : index
      %34 = vector.load %arg7[%c0_13, %c0_14] : memref<1x64xf32, #tpu.memory_space<vmem>>, vector<1x64xf32>
      %cst_15 = arith.constant dense<0.000000e+00> : vector<64xf32>
      %35 = vector.multi_reduction <add>, %22, %cst_15 [0] : vector<128x64xf32> to vector<64xf32>
      %36 = vector.shape_cast %35 : vector<64xf32> to vector<1x64xf32>
      %37 = arith.addf %34, %36 : vector<1x64xf32>
      %c0_16 = arith.constant 0 : index
      %c0_17 = arith.constant 0 : index
      %38 = vector.load %arg7[%c0_16, %c0_17] : memref<1x64xf32, #tpu.memory_space<vmem>>, vector<1x64xf32>
      tpu.vector_store %arg7[%c0_16, %c0_17], %37 {strides = array<i32>} : memref<1x64xf32, #tpu.memory_space<vmem>>, vector<1x64xf32>,
      %c0_18 = arith.constant 0 : index
      %c0_19 = arith.constant 0 : index
      %39 = vector.load %arg8[%c0_18, %c0_19] : memref<1x64xf32, #tpu.memory_space<vmem>>, vector<1x64xf32>
      %40 = arith.mulf %22, %22 : vector<128x64xf32>
      %cst_20 = arith.constant dense<0.000000e+00> : vector<64xf32>
      %41 = vector.multi_reduction <add>, %40, %cst_20 [0] : vector<128x64xf32> to vector<64xf32>
      %42 = vector.shape_cast %41 : vector<64xf32> to vector<1x64xf32>
      %43 = arith.addf %39, %42 : vector<1x64xf32>
      %c0_21 = arith.constant 0 : index
      %c0_22 = arith.constant 0 : index
      %44 = vector.load %arg8[%c0_21, %c0_22] : memref<1x64xf32, #tpu.memory_space<vmem>>, vector<1x64xf32>
      tpu.vector_store %arg8[%c0_21, %c0_22], %43 {strides = array<i32>} : memref<1x64xf32, #tpu.memory_space<vmem>>, vector<1x64xf32>,
    } else {
    }
    %c1_i32_11 = arith.constant 1 : i32
    %31 = arith.cmpi eq, %arg0, %c1_i32_11 : i32
    %32 = arith.extui %31 : i1 to i32
    %c0_i32_12 = arith.constant 0 : i32
    %33 = arith.cmpi ne, %32, %c0_i32_12 : i32
    scf.if %33 {
      %c0_13 = arith.constant 0 : index
      %c0_14 = arith.constant 0 : index
      %34 = vector.load %arg7[%c0_13, %c0_14] : memref<1x64xf32, #tpu.memory_space<vmem>>, vector<1x64xf32>
      %c0_15 = arith.constant 0 : index
      %c0_16 = arith.constant 0 : index
      %35 = vector.load %arg8[%c0_15, %c0_16] : memref<1x64xf32, #tpu.memory_space<vmem>>, vector<1x64xf32>
      %36 = vector.extract_strided_slice %34 {offsets = [0, 0], sizes = [1, 32], strides = [1, 1]} : vector<1x64xf32> to vector<1x32xf32>
      %37 = vector.extract_strided_slice %34 {offsets = [0, 32], sizes = [1, 32], strides = [1, 1]} : vector<1x64xf32> to vector<1x32xf32>
      %38 = arith.addf %36, %37 : vector<1x32xf32>
      %39 = vector.extract_strided_slice %35 {offsets = [0, 0], sizes = [1, 32], strides = [1, 1]} : vector<1x64xf32> to vector<1x32xf32>
      %40 = vector.extract_strided_slice %35 {offsets = [0, 32], sizes = [1, 32], strides = [1, 1]} : vector<1x64xf32> to vector<1x32xf32>
      %41 = arith.addf %39, %40 : vector<1x32xf32>
      %cst_17 = arith.constant 0.001953125 : f32
      %42 = vector.broadcast %cst_17 : f32 to vector<1x32xf32>
      %43 = arith.mulf %38, %42 : vector<1x32xf32>
      %cst_18 = arith.constant 0.001953125 : f32
      %44 = vector.broadcast %cst_18 : f32 to vector<1x32xf32>
      %45 = arith.mulf %41, %44 : vector<1x32xf32>
      %46 = arith.mulf %43, %43 : vector<1x32xf32>
      %47 = arith.subf %45, %46 : vector<1x32xf32>
      %cst_19 = arith.constant 9.99999974E-6 : f32
      %48 = vector.broadcast %cst_19 : f32 to vector<1x32xf32>
      %49 = arith.addf %47, %48 : vector<1x32xf32>
      %50 = math.rsqrt %49 : vector<1x32xf32>
      %c0_20 = arith.constant 0 : index
      %c0_21 = arith.constant 0 : index
      %51 = vector.load %arg4[%c0_20, %c0_21] : memref<1x32xf32, #tpu.memory_space<vmem>>, vector<1x32xf32>
      %52 = arith.mulf %51, %50 : vector<1x32xf32>
      %c0_22 = arith.constant 0 : index
      %c0_23 = arith.constant 0 : index
      %53 = vector.load %arg5[%c0_22, %c0_23] : memref<1x32xf32, #tpu.memory_space<vmem>>, vector<1x32xf32>
      %54 = arith.mulf %43, %52 : vector<1x32xf32>
      %55 = arith.subf %53, %54 : vector<1x32xf32>
      %56 = tpu.concatenate %52, %52 in 1 : vector<1x32xf32>, vector<1x32xf32> -> vector<1x64xf32>
      %57 = tpu.concatenate %55, %55 in 1 : vector<1x32xf32>, vector<1x32xf32> -> vector<1x64xf32>
      %58 = vector.broadcast %56 : vector<1x64xf32> to vector<128x64xf32>
      %59 = arith.mulf %22, %58 : vector<128x64xf32>
      %60 = vector.broadcast %57 : vector<1x64xf32> to vector<128x64xf32>
      %61 = arith.addf %59, %60 : vector<128x64xf32>
      %cst_24 = arith.constant 0.000000e+00 : f32
      %62 = vector.broadcast %cst_24 : f32 to vector<128x64xf32>
      %63 = arith.maximumf %61, %62 : vector<128x64xf32>
      %c0_25 = arith.constant 0 : index
      %c0_26 = arith.constant 0 : index
      %64 = vector.load %arg6[%c0_25, %c0_26] : memref<128x64xf32, #tpu.memory_space<vmem>>, vector<128x64xf32>
      tpu.vector_store %arg6[%c0_25, %c0_26], %63 {strides = array<i32>} : memref<128x64xf32, #tpu.memory_space<vmem>>, vector<128x64xf32>,
    } else {
    }
    return
  }
  func.func @transform_0(%arg0: i32, %arg1: i32) -> (i32, i32) {
    %c0_i32 = arith.constant 0 : i32
    %c0_i32_0 = arith.constant 0 : i32
    return %arg1, %c0_i32 : i32, i32
  }
  func.func @transform_1(%arg0: i32, %arg1: i32) -> (i32, i32) {
    %c0_i32 = arith.constant 0 : i32
    %c0_i32_0 = arith.constant 0 : i32
    %c0_i32_1 = arith.constant 0 : i32
    return %c0_i32, %c0_i32_0 : i32, i32
  }
  func.func @transform_2(%arg0: i32, %arg1: i32) -> (i32, i32) {
    %c0_i32 = arith.constant 0 : i32
    %c0_i32_0 = arith.constant 0 : i32
    %c0_i32_1 = arith.constant 0 : i32
    return %c0_i32, %c0_i32_0 : i32, i32
  }
  func.func @transform_3(%arg0: i32, %arg1: i32) -> (i32, i32) {
    %c0_i32 = arith.constant 0 : i32
    %c0_i32_0 = arith.constant 0 : i32
    %c0_i32_1 = arith.constant 0 : i32
    return %c0_i32, %c0_i32_0 : i32, i32
  }
  func.func @transform_4(%arg0: i32, %arg1: i32) -> (i32, i32) {
    %0 = arith.muli %arg0, %arg1 : i32
    %c0_i32 = arith.constant 0 : i32
    %c0_i32_0 = arith.constant 0 : i32
    return %0, %c0_i32 : i32, i32
  }
}

</mosaic_0001>

<llo_original>
// kernel: g_block_forward.1
$region0: #{g_block_forward.1}
  #allocation0 [shape = 'u32[]', space=smem, size = 0x4, offset = 0x4, fixed_abs, tag = 'smem constant byte address 0x4 - core index']
  #allocation1 [shape = 'u32[72,128]{1,0:T(1,128)}', space=vmem, size = 0x9000, scoped, tag = 'internal scratch']
  #allocation2 [shape = 'f32[1,64]{1,0:T(1,128)}', space=vmem, size = 0x200, scoped, tag = 'scratch operand']
  #allocation3 [shape = 'f32[1,64]{1,0:T(1,128)}', space=vmem, size = 0x200, scoped, tag = 'scratch operand']
  %s0 = inlined_call_operand.vmem [shape: bf16[256,36], index: 0, kind: input, shape index: {}]
  %s1 = inlined_call_operand.vmem [shape: bf16[108,64], index: 1, kind: input, shape index: {}]
  %s2 = inlined_call_operand.vmem [shape: f32[1,32], index: 2, kind: input, shape index: {}]
  %s3 = inlined_call_operand.vmem [shape: f32[1,32], index: 3, kind: input, shape index: {}]
  %s4 = inlined_call_operand.vmem [shape: f32[256,64], index: 4, kind: output, shape index: {}]
  %s5 = sld [smem:[#allocation0]]
  $region61: #{g_block_forward.1} parent=0
    _
  %s7 = ssub.s32 1, %s5
  %s8 = scalar_select 0, %s7, %s5
  loop: start=0, step=1, limit=6
  $region2: #{g_block_forward.1} parent=0 // loop_pre_header
    _
  $region3: #{g_block_forward.1} parent=0 // loop_header
    %s10 = sphi 0, %s14
    %p11 = scmp.ge.s32.totalorder %s10, 6
    %s17 = sphi 0, %s29
    %s18 = sphi 0, %s25
    %s19 = sphi 0, %s17
    %s20 = sphi 0, %s18
    %s21 = sphi 0, %s19
    %s22 = sphi 0, %s20
    %s32 = sphi 0, %s34
    %s35 = sphi 0, %s32
    %s36 = sphi 0, %s35
    %s52 = sphi 0, %s36
    %s56 = sphi 0, %s56
    %s58 = sphi 0, %s56
    %s59 = sphi 0, %s58
    %s73 = sphi 0, %s59
    %s77 = sphi 0, %s77
    %s79 = sphi 0, %s77
    %s80 = sphi 0, %s79
    %s94 = sphi 0, %s80
    %s98 = sphi 0, %s98
    %s100 = sphi 0, %s98
    %s101 = sphi 0, %s100
    %s115 = sphi 0, %s101
    %s123 = sphi 0, %s125
    %s126 = sphi 0, %s123
    %s127 = sphi 0, %s126
    %s143 = sphi 0, %s127
  $region4: #{g_block_forward.1} parent=0 // loop_header_branch
    %13 = sbr.rel (%p11) target = $region8
  $region5: #{g_block_forward.1} parent=0 // loop_body
    %s15 = ssub.s32 %s10, 1
    %s16 = ssub.s32 %s10, 2
    %s23 = sadd.s32 1, %s18
    %p24 = scmp.ge.s32.totalorder %s23, 2
    %s25 = scalar_select %p24, 0, %s23
    %s26 = sadd.s32 1, %s17
    %s27 = scalar_select %p24, %s26, %s17
    %p28 = scmp.ge.s32.totalorder %s27, 2
    %s29 = scalar_select %p28, 0, %s27
    %s30 = ssub.s32 %s18, %s25
    %p31 = scmp.eq.s32.totalorder %s30, 0
    %s33 = sadd.s32 %s32, 1
    %s34 = scalar_select %p31, %s32, %s33
    %p37 = pneg %p31
    %p38 = scmp.eq.s32.totalorder %s10, 3
    %p39 = por %p37, %p38
    %p40 = scmp.ne.s32.totalorder %s32, %s35
    %p41 = scmp.eq.s32.totalorder %s10, 0
    %p42 = por %p40, %p41
    %p43 = scmp.ne.s32.totalorder %s32, %s35
    %p44 = scmp.eq.s32.totalorder %s15, 3
    %p45 = por %p43, %p44
    %p46 = scmp.ne.s32.totalorder %s35, %s36
    %p47 = scmp.eq.s32.totalorder %s15, 0
    %p48 = por %p46, %p47
    %p49 = scmp.ne.s32.totalorder %s35, %s36
    %p50 = scmp.eq.s32.totalorder %s16, 3
    %p51 = por %p49, %p50
    %p53 = scmp.ne.s32.totalorder %s36, %s52
    %p54 = scmp.eq.s32.totalorder %s16, 0
    %p55 = por %p53, %p54
    %s57 = sadd.s32 %s56, 1
    %p60 = scmp.eq.s32.totalorder %s10, 3
    %p61 = scmp.ne.s32.totalorder %s56, %s58
    %p62 = scmp.eq.s32.totalorder %s10, 0
    %p63 = por %p61, %p62
    %p64 = scmp.ne.s32.totalorder %s56, %s58
    %p65 = scmp.eq.s32.totalorder %s15, 3
    %p66 = por %p64, %p65
    %p67 = scmp.ne.s32.totalorder %s58, %s59
    %p68 = scmp.eq.s32.totalorder %s15, 0
    %p69 = por %p67, %p68
    %p70 = scmp.ne.s32.totalorder %s58, %s59
    %p71 = scmp.eq.s32.totalorder %s16, 3
    %p72 = por %p70, %p71
    %p74 = scmp.ne.s32.totalorder %s59, %s73
    %p75 = scmp.eq.s32.totalorder %s16, 0
    %p76 = por %p74, %p75
    %s78 = sadd.s32 %s77, 1
    %p81 = scmp.eq.s32.totalorder %s10, 3
    %p82 = scmp.ne.s32.totalorder %s77, %s79
    %p83 = scmp.eq.s32.totalorder %s10, 0
    %p84 = por %p82, %p83
    %p85 = scmp.ne.s32.totalorder %s77, %s79
    %p86 = scmp.eq.s32.totalorder %s15, 3
    %p87 = por %p85, %p86
    %p88 = scmp.ne.s32.totalorder %s79, %s80
    %p89 = scmp.eq.s32.totalorder %s15, 0
    %p90 = por %p88, %p89
    %p91 = scmp.ne.s32.totalorder %s79, %s80
    %p92 = scmp.eq.s32.totalorder %s16, 3
    %p93 = por %p91, %p92
    %p95 = scmp.ne.s32.totalorder %s80, %s94
    %p96 = scmp.eq.s32.totalorder %s16, 0
    %p97 = por %p95, %p96
    %s99 = sadd.s32 %s98, 1
    %p102 = scmp.eq.s32.totalorder %s10, 3
    %p103 = scmp.ne.s32.totalorder %s98, %s100
    %p104 = scmp.eq.s32.totalorder %s10, 0
    %p105 = por %p103, %p104
    %p106 = scmp.ne.s32.totalorder %s98, %s100
    %p107 = scmp.eq.s32.totalorder %s15, 3
    %p108 = por %p106, %p107
    %p109 = scmp.ne.s32.totalorder %s100, %s101
    %p110 = scmp.eq.s32.totalorder %s15, 0
    %p111 = por %p109, %p110
    %p112 = scmp.ne.s32.totalorder %s100, %s101
    %p113 = scmp.eq.s32.totalorder %s16, 3
    %p114 = por %p112, %p113
    %p116 = scmp.ne.s32.totalorder %s101, %s115
    %p117 = scmp.eq.s32.totalorder %s16, 0
    %p118 = por %p116, %p117
    %s119 = smul.u32 %s17, %s18
    %s120 = smul.u32 %s29, %s25
    %s121 = ssub.s32 %s119, %s120
    %p122 = scmp.eq.s32.totalorder %s121, 0
    %s124 = sadd.s32 %s123, 1
    %s125 = scalar_select %p122, %s123, %s124
    %p128 = pneg %p122
    %p129 = scmp.eq.s32.totalorder %s10, 3
    %p130 = por %p128, %p129
    %p131 = scmp.ne.s32.totalorder %s123, %s126
    %p132 = scmp.eq.s32.totalorder %s10, 0
    %p133 = por %p131, %p132
    %p134 = scmp.ne.s32.totalorder %s123, %s126
    %p135 = scmp.eq.s32.totalorder %s15, 3
    %p136 = por %p134, %p135
    %p137 = scmp.ne.s32.totalorder %s126, %s127
    %p138 = scmp.eq.s32.totalorder %s15, 0
    %p139 = por %p137, %p138
    %p140 = scmp.ne.s32.totalorder %s126, %s127
    %p141 = scmp.eq.s32.totalorder %s16, 3
    %p142 = por %p140, %p141
    %p144 = scmp.ne.s32.totalorder %s127, %s143
    %p145 = scmp.eq.s32.totalorder %s16, 0
    %p146 = por %p144, %p145
    %p147 = scmp.le.s32.totalorder 1, %s10
    %p148 = scmp.lt.s32.totalorder %s10, 5
    %p149 = pnand %p147, %p148
    %p150 = pneg %p149
    // Predicated region
    $region9: #{g_block_forward.1} parent=5 // pred_check
      _
    $region10: #{g_block_forward.1} parent=5 // pred_check_branch
      %152 = sbr.rel (%p149) target = $region12
    $region11: #{g_block_forward.1} parent=5 // pred_region
      %s153 = ssub.s32 %s10, 1
      // Predicated region
      $region13: #{g_block_forward.1} parent=11 // pred_check
        %p154 = pneg %p69
      $region14: #{g_block_forward.1} parent=11 // pred_check_branch
        %156 = sbr.rel (%p154) target = $region16
      $region15: #{g_block_forward.1} parent=11 // pred_region
        _
      $region16: #{g_block_forward.1} parent=11 // pred_fallthru
        _
      // Predicated region
      $region17: #{g_block_forward.1} parent=11 // pred_check
        %p157 = pneg %p90
      $region18: #{g_block_forward.1} parent=11 // pred_check_branch
        %159 = sbr.rel (%p157) target = $region20
      $region19: #{g_block_forward.1} parent=11 // pred_region
        _
      $region20: #{g_block_forward.1} parent=11 // pred_fallthru
        _
      // Predicated region
      $region21: #{g_block_forward.1} parent=11 // pred_check
        %p160 = pneg %p111
      $region22: #{g_block_forward.1} parent=11 // pred_check_branch
        %162 = sbr.rel (%p160) target = $region24
      $region23: #{g_block_forward.1} parent=11 // pred_region
        _
      $region24: #{g_block_forward.1} parent=11 // pred_fallthru
        _
    $region12: #{g_block_forward.1} parent=5 // pred_fallthru
      _
    %p163 = scmp.lt.s32.totalorder %s10, 4
    // Predicated region
    $region25: #{g_block_forward.1} parent=5 // pred_check
      %p164 = pneg %p163
    $region26: #{g_block_forward.1} parent=5 // pred_check_branch
      %166 = sbr.rel (%p164) target = $region28
    $region27: #{g_block_forward.1} parent=5 // pred_region
      // Predicated region
      $region29: #{g_block_forward.1} parent=27 // pred_check
        %p167 = pneg %p42
      $region30: #{g_block_forward.1} parent=27 // pred_check_branch
        %169 = sbr.rel (%p167) target = $region32
      $region31: #{g_block_forward.1} parent=27 // pred_region
        %s170 = smul.u32 16, %s18
        %p171 = scmp.lt.s32.totalorder %s170, 31
        %s172 = scalar_select %p171, %s170, 31
        %s173 = smul.addr %s172, 4
        %s174 = scalar_lea.vmem %s0, %s173
        %s175 = smul.u32 16, %s18
      $region32: #{g_block_forward.1} parent=27 // pred_fallthru
        _
    $region28: #{g_block_forward.1} parent=5 // pred_fallthru
      _
    %p176 = scmp.le.s32.totalorder 1, %s10
    %p177 = scmp.lt.s32.totalorder %s10, 5
    %p178 = pnand %p176, %p177
    %p179 = pneg %p178
    // Predicated region
    $region33: #{g_block_forward.1} parent=5 // pred_check
      _
    $region34: #{g_block_forward.1} parent=5 // pred_check_branch
      %181 = sbr.rel (%p178) target = $region36
    $region35: #{g_block_forward.1} parent=5 // pred_region
      %s182 = ssub.s32 %s10, 1
      %s183 = smul.u32 16, %s20
      %p184 = scmp.lt.s32.totalorder %s183, 31
      %s185 = scalar_select %p184, %s183, 31
      %s186 = smul.addr %s185, 4
      %s187 = scalar_lea.vmem %s0, %s186
      %p188 = pneg %p48
      %p189 = pneg %p45
      %p190 = pneg %p69
      %p191 = pneg %p66
      %p192 = pneg %p90
      %p193 = pneg %p87
      %p194 = pneg %p111
      %p195 = pneg %p108
      %p196 = pneg %p139
      %p197 = pneg %p136
      %s198 = smul.u32 %s19, %s20
      %s199 = smul.u32 16, %s198
      %p200 = scmp.lt.s32.totalorder %s199, 31
      %s201 = scalar_select %p200, %s199, 31
      %s202 = smul.addr %s201, 8
      %s203 = scalar_lea.vmem %s4, %s202
      %s204 = smul.u32 16, %s20
      %p205 = scmp.lt.s32.totalorder %s204, 31
      %s206 = scalar_select %p205, %s204, 31
      %s207 = smul.addr %s206, 4
      %s208 = scalar_lea.vmem %s0, %s207
      %s209 = smul.u32 16, %s20
      %s210 = smul.u32 %s19, %s20
      %s211 = smul.u32 16, %s210
      %p212 = scmp.lt.s32.totalorder %s211, 31
      %s213 = scalar_select %p212, %s211, 31
      %s214 = smul.addr %s213, 8
      %s215 = scalar_lea.vmem %s4, %s214
      %s216 = smul.u32 %s19, %s20
      %s217 = smul.u32 16, %s216
      %v219 = vld [vmem:[%s208] sm:$0xf]
      %v220 = vld [vmem:[%s208 + $0x4] sm:$0xf]
      %v221 = vld [vmem:[%s208 + $0x8] sm:$0xf]
      %v222 = vld [vmem:[%s208 + $0xc] sm:$0xf]
      %v223 = vld [vmem:[%s208 + $0x10] sm:$0xf]
      %v224 = vld [vmem:[%s208 + $0x14] sm:$0xf]
      %v225 = vld [vmem:[%s208 + $0x18] sm:$0xf]
      %v226 = vld [vmem:[%s208 + $0x1c] sm:$0xf]
      %v227 = vld [vmem:[%s208 + $0x20] sm:$0xf]
      %v228 = vld [vmem:[%s208 + $0x24] sm:$0xf]
      %v229 = vld [vmem:[%s208 + $0x28] sm:$0xf]
      %v230 = vld [vmem:[%s208 + $0x2c] sm:$0xf]
      %v231 = vld [vmem:[%s208 + $0x30] sm:$0xf]
      %v232 = vld [vmem:[%s208 + $0x34] sm:$0xf]
      %v233 = vld [vmem:[%s208 + $0x38] sm:$0xf]
      %v234 = vld [vmem:[%s208 + $0x3c] sm:$0xf]
      %v235 = vunpack.c.l.bf16 %v219
      %v236 = vunpack.c.l.bf16 %v220
      %v237 = vunpack.c.l.bf16 %v221
      %v238 = vunpack.c.l.bf16 %v222
      %v239 = vunpack.c.l.bf16 %v223
      %v240 = vunpack.c.l.bf16 %v224
      %v241 = vunpack.c.l.bf16 %v225
      %v242 = vunpack.c.l.bf16 %v226
      %v243 = vunpack.c.l.bf16 %v227
      %v244 = vunpack.c.l.bf16 %v228
      %v245 = vunpack.c.l.bf16 %v229
      %v246 = vunpack.c.l.bf16 %v230
      %v247 = vunpack.c.l.bf16 %v231
      %v248 = vunpack.c.l.bf16 %v232
      %v249 = vunpack.c.l.bf16 %v233
      %v250 = vunpack.c.l.bf16 %v234
      %v251 = vlaneseq
      %v252 = vshrl.u32 %v251, 7
      %v253 = vadd.s32 %v252, 8
      %v254 = vadd.s32 %v252, 16
      %v255 = vadd.s32 %v252, 24
      %v256 = vadd.s32 %v252, 32
      %v257 = vadd.s32 %v252, 40
      %v258 = vadd.s32 %v252, 48
      %v259 = vadd.s32 %v252, 56
      %v260 = vadd.s32 %v252, 64
      %v261 = vadd.s32 %v252, 72
      %v262 = vadd.s32 %v252, 80
      %v263 = vadd.s32 %v252, 88
      %v264 = vadd.s32 %v252, 96
      %v265 = vadd.s32 %v252, 104
      %v266 = vadd.s32 %v252, 112
      %v267 = vadd.s32 %v252, 120
      %v268 = vand.u32 %v252, 63
      %v269 = vand.u32 %v253, 63
      %v270 = vand.u32 %v254, 63
      %v271 = vand.u32 %v255, 63
      %v272 = vand.u32 %v256, 63
      %v273 = vand.u32 %v257, 63
      %v274 = vand.u32 %v258, 63
      %v275 = vand.u32 %v259, 63
      %v276 = vand.u32 %v260, 63
      %v277 = vand.u32 %v261, 63
      %v278 = vand.u32 %v262, 63
      %v279 = vand.u32 %v263, 63
      %v280 = vand.u32 %v264, 63
      %v281 = vand.u32 %v265, 63
      %v282 = vand.u32 %v266, 63
      %v283 = vand.u32 %v267, 63
      %vm284 = vcmp.eq.s32.totalorder %v268, 0
      %vm285 = vcmp.eq.s32.totalorder %v269, 0
      %vm286 = vcmp.eq.s32.totalorder %v270, 0
      %vm287 = vcmp.eq.s32.totalorder %v271, 0
      %vm288 = vcmp.eq.s32.totalorder %v272, 0
      %vm289 = vcmp.eq.s32.totalorder %v273, 0
      %vm290 = vcmp.eq.s32.totalorder %v274, 0
      %vm291 = vcmp.eq.s32.totalorder %v275, 0
      %vm292 = vcmp.eq.s32.totalorder %v276, 0
      %vm293 = vcmp.eq.s32.totalorder %v277, 0
      %vm294 = vcmp.eq.s32.totalorder %v278, 0
      %vm295 = vcmp.eq.s32.totalorder %v279, 0
      %vm296 = vcmp.eq.s32.totalorder %v280, 0
      %vm297 = vcmp.eq.s32.totalorder %v281, 0
      %vm298 = vcmp.eq.s32.totalorder %v282, 0
      %vm299 = vcmp.eq.s32.totalorder %v283, 0
      %v300 = vrot.slane %v235, 7
      %v301 = vrot.slane %v236, 7
      %v302 = vrot.slane %v237, 7
      %v303 = vrot.slane %v238, 7
      %v304 = vrot.slane %v239, 7
      %v305 = vrot.slane %v240, 7
      %v306 = vrot.slane %v241, 7
      %v307 = vrot.slane %v242, 7
      %v308 = vrot.slane %v243, 7
      %v309 = vrot.slane %v244, 7
      %v310 = vrot.slane %v245, 7
      %v311 = vrot.slane %v246, 7
      %v312 = vrot.slane %v247, 7
      %v313 = vrot.slane %v248, 7
      %v314 = vrot.slane %v249, 7
      %v315 = vrot.slane %v250, 7
      %vm316 = vcmp.lt.s32.totalorder %v252, 1
      %v317 = vsel %vm316, %v314, %v315
      %v318 = vsel %vm316, %v313, %v314
      %v319 = vsel %vm316, %v312, %v313
      %v320 = vsel %vm316, %v311, %v312
      %v321 = vsel %vm316, %v310, %v311
      %v322 = vsel %vm316, %v309, %v310
      %v323 = vsel %vm316, %v308, %v309
      %v324 = vsel %vm316, %v307, %v308
      %v325 = vsel %vm316, %v306, %v307
      %v326 = vsel %vm316, %v305, %v306
      %v327 = vsel %vm316, %v304, %v305
      %v328 = vsel %vm316, %v303, %v304
      %v329 = vsel %vm316, %v302, %v303
      %v330 = vsel %vm316, %v301, %v302
      %v331 = vsel %vm316, %v300, %v301
      %v332 = vsel %vm316, %v315, %v300
      %v333 = vsel %vm284, 1, 0
      %v334 = vsel %vm285, 1, 0
      %v335 = vsel %vm286, 1, 0
      %v336 = vsel %vm287, 1, 0
      %v337 = vsel %vm288, 1, 0
      %v338 = vsel %vm289, 1, 0
      %v339 = vsel %vm290, 1, 0
      %v340 = vsel %vm291, 1, 0
      %v341 = vsel %vm292, 1, 0
      %v342 = vsel %vm293, 1, 0
      %v343 = vsel %vm294, 1, 0
      %v344 = vsel %vm295, 1, 0
      %v345 = vsel %vm296, 1, 0
      %v346 = vsel %vm297, 1, 0
      %v347 = vsel %vm298, 1, 0
      %v348 = vsel %vm299, 1, 0
      %vm349 = vcmp.eq.s32.totalorder %v333, 1
      %vm350 = vcmp.eq.s32.totalorder %v334, 1
      %vm351 = vcmp.eq.s32.totalorder %v335, 1
      %vm352 = vcmp.eq.s32.totalorder %v336, 1
      %vm353 = vcmp.eq.s32.totalorder %v337, 1
      %vm354 = vcmp.eq.s32.totalorder %v338, 1
      %vm355 = vcmp.eq.s32.totalorder %v339, 1
      %vm356 = vcmp.eq.s32.totalorder %v340, 1
      %vm357 = vcmp.eq.s32.totalorder %v341, 1
      %vm358 = vcmp.eq.s32.totalorder %v342, 1
      %vm359 = vcmp.eq.s32.totalorder %v343, 1
      %vm360 = vcmp.eq.s32.totalorder %v344, 1
      %vm361 = vcmp.eq.s32.totalorder %v345, 1
      %vm362 = vcmp.eq.s32.totalorder %v346, 1
      %vm363 = vcmp.eq.s32.totalorder %v347, 1
      %vm364 = vcmp.eq.s32.totalorder %v348, 1
      %v365 = vsel %vm349, 0.0, %v332
      %v366 = vsel %vm350, 0.0, %v331
      %v367 = vsel %vm351, 0.0, %v330
      %v368 = vsel %vm352, 0.0, %v329
      %v369 = vsel %vm353, 0.0, %v328
      %v370 = vsel %vm354, 0.0, %v327
      %v371 = vsel %vm355, 0.0, %v326
      %v372 = vsel %vm356, 0.0, %v325
      %v373 = vsel %vm357, 0.0, %v324
      %v374 = vsel %vm358, 0.0, %v323
      %v375 = vsel %vm359, 0.0, %v322
      %v376 = vsel %vm360, 0.0, %v321
      %v377 = vsel %vm361, 0.0, %v320
      %v378 = vsel %vm362, 0.0, %v319
      %v379 = vsel %vm363, 0.0, %v318
      %v380 = vsel %vm364, 0.0, %v317
      %vm381 = vcmp.eq.s32.totalorder %v268, 63
      %vm382 = vcmp.eq.s32.totalorder %v269, 63
      %vm383 = vcmp.eq.s32.totalorder %v270, 63
      %vm384 = vcmp.eq.s32.totalorder %v271, 63
      %vm385 = vcmp.eq.s32.totalorder %v272, 63
      %vm386 = vcmp.eq.s32.totalorder %v273, 63
      %vm387 = vcmp.eq.s32.totalorder %v274, 63
      %vm388 = vcmp.eq.s32.totalorder %v275, 63
      %vm389 = vcmp.eq.s32.totalorder %v276, 63
      %vm390 = vcmp.eq.s32.totalorder %v277, 63
      %vm391 = vcmp.eq.s32.totalorder %v278, 63
      %vm392 = vcmp.eq.s32.totalorder %v279, 63
      %vm393 = vcmp.eq.s32.totalorder %v280, 63
      %vm394 = vcmp.eq.s32.totalorder %v281, 63
      %vm395 = vcmp.eq.s32.totalorder %v282, 63
      %vm396 = vcmp.eq.s32.totalorder %v283, 63
      %v397 = vrot.slane %v235, 1
      %v398 = vrot.slane %v236, 1
      %v399 = vrot.slane %v237, 1
      %v400 = vrot.slane %v238, 1
      %v401 = vrot.slane %v239, 1
      %v402 = vrot.slane %v240, 1
      %v403 = vrot.slane %v241, 1
      %v404 = vrot.slane %v242, 1
      %v405 = vrot.slane %v243, 1
      %v406 = vrot.slane %v244, 1
      %v407 = vrot.slane %v245, 1
      %v408 = vrot.slane %v246, 1
      %v409 = vrot.slane %v247, 1
      %v410 = vrot.slane %v248, 1
      %v411 = vrot.slane %v249, 1
      %v412 = vrot.slane %v250, 1
      %vm413 = vcmp.lt.s32.totalorder %v252, 7
      %v414 = vsel %vm413, %v411, %v412
      %v415 = vsel %vm413, %v410, %v411
      %v416 = vsel %vm413, %v409, %v410
      %v417 = vsel %vm413, %v408, %v409
      %v418 = vsel %vm413, %v407, %v408
      %v419 = vsel %vm413, %v406, %v407
      %v420 = vsel %vm413, %v405, %v406
      %v421 = vsel %vm413, %v404, %v405
      %v422 = vsel %vm413, %v403, %v404
      %v423 = vsel %vm413, %v402, %v403
      %v424 = vsel %vm413, %v401, %v402
      %v425 = vsel %vm413, %v400, %v401
      %v426 = vsel %vm413, %v399, %v400
      %v427 = vsel %vm413, %v398, %v399
      %v428 = vsel %vm413, %v397, %v398
      %v429 = vsel %vm413, %v412, %v397
      %v430 = vsel %vm381, 1, 0
      %v431 = vsel %vm382, 1, 0
      %v432 = vsel %vm383, 1, 0
      %v433 = vsel %vm384, 1, 0
      %v434 = vsel %vm385, 1, 0
      %v435 = vsel %vm386, 1, 0
      %v436 = vsel %vm387, 1, 0
      %v437 = vsel %vm388, 1, 0
      %v438 = vsel %vm389, 1, 0
      %v439 = vsel %vm390, 1, 0
      %v440 = vsel %vm391, 1, 0
      %v441 = vsel %vm392, 1, 0
      %v442 = vsel %vm393, 1, 0
      %v443 = vsel %vm394, 1, 0
      %v444 = vsel %vm395, 1, 0
      %v445 = vsel %vm396, 1, 0
      %vm446 = vcmp.eq.s32.totalorder %v430, 1
      %vm447 = vcmp.eq.s32.totalorder %v431, 1
      %vm448 = vcmp.eq.s32.totalorder %v432, 1
      %vm449 = vcmp.eq.s32.totalorder %v433, 1
      %vm450 = vcmp.eq.s32.totalorder %v434, 1
      %vm451 = vcmp.eq.s32.totalorder %v435, 1
      %vm452 = vcmp.eq.s32.totalorder %v436, 1
      %vm453 = vcmp.eq.s32.totalorder %v437, 1
      %vm454 = vcmp.eq.s32.totalorder %v438, 1
      %vm455 = vcmp.eq.s32.totalorder %v439, 1
      %vm456 = vcmp.eq.s32.totalorder %v440, 1
      %vm457 = vcmp.eq.s32.totalorder %v441, 1
      %vm458 = vcmp.eq.s32.totalorder %v442, 1
      %vm459 = vcmp.eq.s32.totalorder %v443, 1
      %vm460 = vcmp.eq.s32.totalorder %v444, 1
      %vm461 = vcmp.eq.s32.totalorder %v445, 1
      %v462 = vsel %vm446, 0.0, %v428
      %v463 = vsel %vm447, 0.0, %v427
      %v464 = vsel %vm448, 0.0, %v426
      %v465 = vsel %vm449, 0.0, %v425
      %v466 = vsel %vm450, 0.0, %v424
      %v467 = vsel %vm451, 0.0, %v423
      %v468 = vsel %vm452, 0.0, %v422
      %v469 = vsel %vm453, 0.0, %v421
      %v470 = vsel %vm454, 0.0, %v420
      %v471 = vsel %vm455, 0.0, %v419
      %v472 = vsel %vm456, 0.0, %v418
      %v473 = vsel %vm457, 0.0, %v417
      %v474 = vsel %vm458, 0.0, %v416
      %v475 = vsel %vm459, 0.0, %v415
      %v476 = vsel %vm460, 0.0, %v414
      %v477 = vsel %vm461, 0.0, %v429
      %494 = vrot.lane.b32.xlu0 %v235, 36
      %v495 = vpop.permute.xlu0 %494
      %496 = vrot.lane.b32.xlu0 %v236, 36
      %v497 = vpop.permute.xlu0 %496
      %498 = vrot.lane.b32.xlu0 %v237, 36
      %v499 = vpop.permute.xlu0 %498
      %500 = vrot.lane.b32.xlu0 %v238, 36
      %v501 = vpop.permute.xlu0 %500
      %502 = vrot.lane.b32.xlu0 %v239, 36
      %v503 = vpop.permute.xlu0 %502
      %504 = vrot.lane.b32.xlu0 %v240, 36
      %v505 = vpop.permute.xlu0 %504
      %506 = vrot.lane.b32.xlu0 %v241, 36
      %v507 = vpop.permute.xlu0 %506
      %508 = vrot.lane.b32.xlu0 %v242, 36
      %v509 = vpop.permute.xlu0 %508
      %510 = vrot.lane.b32.xlu0 %v243, 36
      %v511 = vpop.permute.xlu0 %510
      %512 = vrot.lane.b32.xlu0 %v244, 36
      %v513 = vpop.permute.xlu0 %512
      %514 = vrot.lane.b32.xlu0 %v245, 36
      %v515 = vpop.permute.xlu0 %514
      %516 = vrot.lane.b32.xlu0 %v246, 36
      %v517 = vpop.permute.xlu0 %516
      %518 = vrot.lane.b32.xlu0 %v247, 36
      %v519 = vpop.permute.xlu0 %518
      %520 = vrot.lane.b32.xlu0 %v248, 36
      %v521 = vpop.permute.xlu0 %520
      %522 = vrot.lane.b32.xlu0 %v249, 36
      %v523 = vpop.permute.xlu0 %522
      %524 = vrot.lane.b32.xlu0 %v250, 36
      %v525 = vpop.permute.xlu0 %524
      %558 = vrot.lane.b32.xlu0 %v462, 72
      %v559 = vpop.permute.xlu0 %558
      %560 = vrot.lane.b32.xlu0 %v463, 72
      %v561 = vpop.permute.xlu0 %560
      %562 = vrot.lane.b32.xlu0 %v464, 72
      %v563 = vpop.permute.xlu0 %562
      %564 = vrot.lane.b32.xlu0 %v465, 72
      %v565 = vpop.permute.xlu0 %564
      %566 = vrot.lane.b32.xlu0 %v466, 72
      %v567 = vpop.permute.xlu0 %566
      %568 = vrot.lane.b32.xlu0 %v467, 72
      %v569 = vpop.permute.xlu0 %568
      %570 = vrot.lane.b32.xlu0 %v468, 72
      %v571 = vpop.permute.xlu0 %570
      %572 = vrot.lane.b32.xlu0 %v469, 72
      %v573 = vpop.permute.xlu0 %572
      %574 = vrot.lane.b32.xlu0 %v470, 72
      %v575 = vpop.permute.xlu0 %574
      %576 = vrot.lane.b32.xlu0 %v471, 72
      %v577 = vpop.permute.xlu0 %576
      %578 = vrot.lane.b32.xlu0 %v472, 72
      %v579 = vpop.permute.xlu0 %578
      %580 = vrot.lane.b32.xlu0 %v473, 72
      %v581 = vpop.permute.xlu0 %580
      %582 = vrot.lane.b32.xlu0 %v474, 72
      %v583 = vpop.permute.xlu0 %582
      %584 = vrot.lane.b32.xlu0 %v475, 72
      %v585 = vpop.permute.xlu0 %584
      %586 = vrot.lane.b32.xlu0 %v476, 72
      %v587 = vpop.permute.xlu0 %586
      %588 = vrot.lane.b32.xlu0 %v477, 72
      %v589 = vpop.permute.xlu0 %588
      %vm606 = vcmask 293888
      %v607 = vsel %vm606, %v365, %v495
      %v608 = vsel %vm606, %v366, %v497
      %v609 = vsel %vm606, %v367, %v499
      %v610 = vsel %vm606, %v368, %v501
      %v611 = vsel %vm606, %v369, %v503
      %v612 = vsel %vm606, %v370, %v505
      %v613 = vsel %vm606, %v371, %v507
      %v614 = vsel %vm606, %v372, %v509
      %v615 = vsel %vm606, %v373, %v511
      %v616 = vsel %vm606, %v374, %v513
      %v617 = vsel %vm606, %v375, %v515
      %v618 = vsel %vm606, %v376, %v517
      %v619 = vsel %vm606, %v377, %v519
      %v620 = vsel %vm606, %v378, %v521
      %v621 = vsel %vm606, %v379, %v523
      %v622 = vsel %vm606, %v380, %v525
      %vm623 = vcmask 588800
      %v624 = vsel %vm623, %v607, %v559
      %v625 = vsel %vm623, %v608, %v561
      %v626 = vsel %vm623, %v609, %v563
      %v627 = vsel %vm623, %v610, %v565
      %v628 = vsel %vm623, %v611, %v567
      %v629 = vsel %vm623, %v612, %v569
      %v630 = vsel %vm623, %v613, %v571
      %v631 = vsel %vm623, %v614, %v573
      %v632 = vsel %vm623, %v615, %v575
      %v633 = vsel %vm623, %v616, %v577
      %v634 = vsel %vm623, %v617, %v579
      %v635 = vsel %vm623, %v618, %v581
      %v636 = vsel %vm623, %v619, %v583
      %v637 = vsel %vm623, %v620, %v585
      %v638 = vsel %vm623, %v621, %v587
      %v639 = vsel %vm623, %v622, %v589
      %v640 = vpack.c.bf16 %v625, %v624
      %v641 = vpack.c.bf16 %v627, %v626
      %v642 = vpack.c.bf16 %v629, %v628
      %v643 = vpack.c.bf16 %v631, %v630
      %v644 = vpack.c.bf16 %v633, %v632
      %v645 = vpack.c.bf16 %v635, %v634
      %v646 = vpack.c.bf16 %v637, %v636
      %v647 = vpack.c.bf16 %v639, %v638
      %v648 = vld [vmem:[%s1] sm:$0xf]
      %v649 = vld [vmem:[%s1 + $0x4] sm:$0xf]
      %v650 = vld [vmem:[%s1 + $0x8] sm:$0xf]
      %v651 = vld [vmem:[%s1 + $0xc] sm:$0xf]
      %v652 = vld [vmem:[%s1 + $0x10] sm:$0xf]
      %v653 = vld [vmem:[%s1 + $0x14] sm:$0xf]
      %v654 = vld [vmem:[%s1 + $0x18] sm:$0xf]
      %v655 = vld [vmem:[%s1 + $0x1c] sm:$0xf]
      %v656 = vld [vmem:[%s1 + $0x20] sm:$0xf]
      %v657 = vld [vmem:[%s1 + $0x24] sm:$0xf]
      %v658 = vld [vmem:[%s1 + $0x28] sm:$0xf]
      %v659 = vld [vmem:[%s1 + $0x2c] sm:$0xf]
      %v660 = vld [vmem:[%s1 + $0x30] sm:$0xf]
      %v661 = vld [vmem:[%s1 + $0x34] sm:$0x3]
      %v676 = vunpack.c.l.b16 %v648
      %v677 = vunpack.c.l.b16 %v649
      %v678 = vunpack.c.l.b16 %v650
      %v679 = vunpack.c.l.b16 %v651
      %v680 = vunpack.c.l.b16 %v652
      %v681 = vunpack.c.l.b16 %v653
      %v682 = vunpack.c.l.b16 %v654
      %v683 = vunpack.c.l.b16 %v655
      %v684 = vunpack.c.l.b16 %v656
      %v685 = vunpack.c.l.b16 %v657
      %v686 = vunpack.c.l.b16 %v658
      %v687 = vunpack.c.l.b16 %v659
      %v688 = vunpack.c.l.b16 %v660
      %v689 = vunpack.c.l.b16 %v661
      %v690 = vpack.c.b16 %v677, %v676
      %v691 = vpack.c.b16 %v679, %v678
      %v692 = vpack.c.b16 %v681, %v680
      %v693 = vpack.c.b16 %v683, %v682
      %v694 = vpack.c.b16 %v685, %v684
      %v695 = vpack.c.b16 %v687, %v686
      %v696 = vpack.c.b16 %v689, %v688
      %vm703 = vcmask 883712
      %v705 = vsel %vm703, %v640, 0
      %v708 = vsel %vm703, %v641, 0
      %v711 = vsel %vm703, %v642, 0
      %v714 = vsel %vm703, %v643, 0
      %v717 = vsel %vm703, %v644, 0
      %v720 = vsel %vm703, %v645, 0
      %v723 = vsel %vm703, %v646, 0
      %v726 = vsel %vm703, %v647, 0
      %vm728 = vcmask 1045504
      %v730 = vsel %vm728, %v696, 0
      %732 = vmatpush.bf16.msra.mxu0 0
      %733 = vmatpush.bf16.msra.mxu0 %v730
      %734 = vmatpush.bf16.msra.mxu0 %v695
      %735 = vmatpush.bf16.msra.mxu0 %v694
      %736 = vmatpush.bf16.msra.mxu0 %v693
      %737 = vmatpush.bf16.msra.mxu0 %v692
      %738 = vmatpush.bf16.msra.mxu0 %v691
      %739 = vmatpush.bf16.msra.mxu0 %v690
      %740 = vmatmul.bf16.gmra.mxu0 %v705
      %v741 = vpop.f32.mrf.mxu0
      %v742 = vadd.f32 0.0, %v741
      %v743 = vpop.f32.mrf.mxu0
      %v744 = vadd.f32 0.0, %v743
      %745 = vmatmul.bf16.gmra.mxu0 %v708
      %v746 = vpop.f32.mrf.mxu0
      %v747 = vadd.f32 0.0, %v746
      %v748 = vpop.f32.mrf.mxu0
      %v749 = vadd.f32 0.0, %v748
      %750 = vmatmul.bf16.gmra.mxu0 %v711
      %v751 = vpop.f32.mrf.mxu0
      %v752 = vadd.f32 0.0, %v751
      %v753 = vpop.f32.mrf.mxu0
      %v754 = vadd.f32 0.0, %v753
      %755 = vmatmul.bf16.gmra.mxu0 %v714
      %v756 = vpop.f32.mrf.mxu0
      %v757 = vadd.f32 0.0, %v756
      %v758 = vpop.f32.mrf.mxu0
      %v759 = vadd.f32 0.0, %v758
      %760 = vmatmul.bf16.gmra.mxu0 %v717
      %v761 = vpop.f32.mrf.mxu0
      %v762 = vadd.f32 0.0, %v761
      %v763 = vpop.f32.mrf.mxu0
      %v764 = vadd.f32 0.0, %v763
      %765 = vmatmul.bf16.gmra.mxu0 %v720
      %v766 = vpop.f32.mrf.mxu0
      %v767 = vadd.f32 0.0, %v766
      %v768 = vpop.f32.mrf.mxu0
      %v769 = vadd.f32 0.0, %v768
      %770 = vmatmul.bf16.gmra.mxu0 %v723
      %v771 = vpop.f32.mrf.mxu0
      %v772 = vadd.f32 0.0, %v771
      %v773 = vpop.f32.mrf.mxu0
      %v774 = vadd.f32 0.0, %v773
      %775 = vmatmul.bf16.gmra.mxu0 %v726
      %v776 = vpop.f32.mrf.mxu0
      %v777 = vadd.f32 0.0, %v776
      %v778 = vpop.f32.mrf.mxu0
      %v779 = vadd.f32 0.0, %v778
      %780 = vdwg.mxu0
      %p781 = scmp.eq.s32.totalorder %s19, 0
      %p782 = scmp.eq.s32.totalorder %s20, 0
      %p783 = pnand %p781, %p782
      %p784 = pneg %p783
      // Predicated region
      $region37: #{g_block_forward.1} parent=35 // pred_check
        _
      $region38: #{g_block_forward.1} parent=35 // pred_check_branch
        %786 = sbr.rel (%p783) target = $region40
      $region39: #{g_block_forward.1} parent=35 // pred_region
        %vm787 = vcmask 516096
        %788 = vst.msk [vmem:[#allocation2] sm:$0x1] %vm787, 0.0
        %789 = vst.msk [vmem:[#allocation3] sm:$0x1] %vm787, 0.0
      $region40: #{g_block_forward.1} parent=35 // pred_fallthru
        _
      // Predicated region
      $region41: #{g_block_forward.1} parent=35 // pred_check
        %p790 = pneg %p781
      $region42: #{g_block_forward.1} parent=35 // pred_check_branch
        %792 = sbr.rel (%p790) target = $region44
      $region43: #{g_block_forward.1} parent=35 // pred_region
        %v793 = vld [vmem:[#allocation2] sm:$0x1]
        %vm794 = vcmask 523264
        %v795 = vsel %vm794, %v742, 0.0
        %v796 = vsel %vm794, %v744, 0.0
        %v797 = vadd.f32 %v795, %v796
        %v798 = vsel %vm794, %v747, 0.0
        %v799 = vadd.f32 %v797, %v798
        %v800 = vsel %vm794, %v749, 0.0
        %v801 = vadd.f32 %v799, %v800
        %v802 = vsel %vm794, %v752, 0.0
        %v803 = vadd.f32 %v801, %v802
        %v804 = vsel %vm794, %v754, 0.0
        %v805 = vadd.f32 %v803, %v804
        %v806 = vsel %vm794, %v757, 0.0
        %v807 = vadd.f32 %v805, %v806
        %v808 = vsel %vm794, %v759, 0.0
        %v809 = vadd.f32 %v807, %v808
        %v810 = vsel %vm794, %v762, 0.0
        %v811 = vadd.f32 %v809, %v810
        %v812 = vsel %vm794, %v764, 0.0
        %v813 = vadd.f32 %v811, %v812
        %v814 = vsel %vm794, %v767, 0.0
        %v815 = vadd.f32 %v813, %v814
        %v816 = vsel %vm794, %v769, 0.0
        %v817 = vadd.f32 %v815, %v816
        %v818 = vsel %vm794, %v772, 0.0
        %v819 = vadd.f32 %v817, %v818
        %v820 = vsel %vm794, %v774, 0.0
        %v821 = vadd.f32 %v819, %v820
        %v822 = vsel %vm794, %v777, 0.0
        %v823 = vadd.f32 %v821, %v822
        %v824 = vsel %vm794, %v779, 0.0
        %v825 = vadd.f32 %v823, %v824
        %v826 = vrot.slane %v825, 4
        %v827 = vadd.f32 %v825, %v826
        %v828 = vrot.slane %v827, 2
        %v829 = vadd.f32 %v827, %v828
        %v830 = vrot.slane %v829, 1
        %v831 = vadd.f32 %v829, %v830
        %v832 = vadd.f32 %v793, %v831
        %vm833 = vcmask 516096
        %834 = vst.msk [vmem:[#allocation2] sm:$0x1] %vm833, %v832
        %v835 = vld [vmem:[#allocation3] sm:$0x1]
        %v836 = vmul.f32 %v742, %v742
        %v837 = vmul.f32 %v744, %v744
        %v838 = vmul.f32 %v747, %v747
        %v839 = vmul.f32 %v749, %v749
        %v840 = vmul.f32 %v752, %v752
        %v841 = vmul.f32 %v754, %v754
        %v842 = vmul.f32 %v757, %v757
        %v843 = vmul.f32 %v759, %v759
        %v844 = vmul.f32 %v762, %v762
        %v845 = vmul.f32 %v764, %v764
        %v846 = vmul.f32 %v767, %v767
        %v847 = vmul.f32 %v769, %v769
        %v848 = vmul.f32 %v772, %v772
        %v849 = vmul.f32 %v774, %v774
        %v850 = vmul.f32 %v777, %v777
        %v851 = vmul.f32 %v779, %v779
        %v852 = vsel %vm794, %v836, 0.0
        %v853 = vsel %vm794, %v837, 0.0
        %v854 = vadd.f32 %v852, %v853
        %v855 = vsel %vm794, %v838, 0.0
        %v856 = vadd.f32 %v854, %v855
        %v857 = vsel %vm794, %v839, 0.0
        %v858 = vadd.f32 %v856, %v857
        %v859 = vsel %vm794, %v840, 0.0
        %v860 = vadd.f32 %v858, %v859
        %v861 = vsel %vm794, %v841, 0.0
        %v862 = vadd.f32 %v860, %v861
        %v863 = vsel %vm794, %v842, 0.0
        %v864 = vadd.f32 %v862, %v863
        %v865 = vsel %vm794, %v843, 0.0
        %v866 = vadd.f32 %v864, %v865
        %v867 = vsel %vm794, %v844, 0.0
        %v868 = vadd.f32 %v866, %v867
        %v869 = vsel %vm794, %v845, 0.0
        %v870 = vadd.f32 %v868, %v869
        %v871 = vsel %vm794, %v846, 0.0
        %v872 = vadd.f32 %v870, %v871
        %v873 = vsel %vm794, %v847, 0.0
        %v874 = vadd.f32 %v872, %v873
        %v875 = vsel %vm794, %v848, 0.0
        %v876 = vadd.f32 %v874, %v875
        %v877 = vsel %vm794, %v849, 0.0
        %v878 = vadd.f32 %v876, %v877
        %v879 = vsel %vm794, %v850, 0.0
        %v880 = vadd.f32 %v878, %v879
        %v881 = vsel %vm794, %v851, 0.0
        %v882 = vadd.f32 %v880, %v881
        %v883 = vrot.slane %v882, 4
        %v884 = vadd.f32 %v882, %v883
        %v885 = vrot.slane %v884, 2
        %v886 = vadd.f32 %v884, %v885
        %v887 = vrot.slane %v886, 1
        %v888 = vadd.f32 %v886, %v887
        %v889 = vadd.f32 %v835, %v888
        %890 = vst.msk [vmem:[#allocation3] sm:$0x1] %vm833, %v889
      $region44: #{g_block_forward.1} parent=35 // pred_fallthru
        _
      %p891 = scmp.eq.s32.totalorder %s19, 1
      // Predicated region
      $region45: #{g_block_forward.1} parent=35 // pred_check
        %p892 = pneg %p891
      $region46: #{g_block_forward.1} parent=35 // pred_check_branch
        %894 = sbr.rel (%p892) target = $region48
      $region47: #{g_block_forward.1} parent=35 // pred_region
        %v895 = vld [vmem:[#allocation2] sm:$0x1]
        %v896 = vld [vmem:[#allocation3] sm:$0x1]
        %898 = vrot.lane.b32.xlu0 %v895, 96
        %v899 = vpop.permute.xlu0 %898
        %v901 = vadd.f32 %v895, %v899
        %903 = vrot.lane.b32.xlu0 %v896, 96
        %v904 = vpop.permute.xlu0 %903
        %v906 = vadd.f32 %v896, %v904
        %v907 = vmul.f32 %v901, 0.001953125
        %v908 = vmul.f32 %v906, 0.001953125
        %v909 = vmul.f32 %v907, %v907
        %v910 = vsub.f32 %v908, %v909
        %v911 = vadd.f32 %v910, 1e-05
        %v912 = vrsqrt.pop %v911
        %v913 = vmul.f32 %v912, %v911
        %v914 = vmul.f32 %v913, %v912
        %v915 = vmul.f32 0.5, %v914
        %v916 = vsub.f32 1.5, %v915
        %v917 = vmul.f32 %v912, %v916
        %vm918 = vweird.f32 %v911
        %vm919 = vweird.f32 %v912
        %vm920 = vmor %vm918, %vm919
        %v921 = vsel %vm920, %v912, %v917
        %v922 = vld [vmem:[%s2] sm:$0x1]
        %v923 = vmul.f32 %v922, %v921
        %v924 = vld [vmem:[%s3] sm:$0x1]
        %v925 = vmul.f32 %v907, %v923
        %v926 = vsub.f32 %v924, %v925
        %v928 = vperm.slane %v923, 0
        %929 = vrot.lane.b32.xlu0 %v928, 32
        %v930 = vpop.permute.xlu0 %929
        %vm932 = vcmask 261120
        %v933 = vsel %vm932, %v923, %v930
        %v935 = vperm.slane %v926, 0
        %936 = vrot.lane.b32.xlu0 %v935, 32
        %v937 = vpop.permute.xlu0 %936
        %v939 = vsel %vm932, %v926, %v937
        %v940 = vperm.slane %v933, 0
        %v941 = vmul.f32 %v742, %v940
        %v942 = vmul.f32 %v744, %v940
        %v943 = vmul.f32 %v747, %v940
        %v944 = vmul.f32 %v749, %v940
        %v945 = vmul.f32 %v752, %v940
        %v946 = vmul.f32 %v754, %v940
        %v947 = vmul.f32 %v757, %v940
        %v948 = vmul.f32 %v759, %v940
        %v949 = vmul.f32 %v762, %v940
        %v950 = vmul.f32 %v764, %v940
        %v951 = vmul.f32 %v767, %v940
        %v952 = vmul.f32 %v769, %v940
        %v953 = vmul.f32 %v772, %v940
        %v954 = vmul.f32 %v774, %v940
        %v955 = vmul.f32 %v777, %v940
        %v956 = vmul.f32 %v779, %v940
        %v957 = vperm.slane %v939, 0
        %v958 = vadd.f32 %v941, %v957
        %v959 = vadd.f32 %v942, %v957
        %v960 = vadd.f32 %v943, %v957
        %v961 = vadd.f32 %v944, %v957
        %v962 = vadd.f32 %v945, %v957
        %v963 = vadd.f32 %v946, %v957
        %v964 = vadd.f32 %v947, %v957
        %v965 = vadd.f32 %v948, %v957
        %v966 = vadd.f32 %v949, %v957
        %v967 = vadd.f32 %v950, %v957
        %v968 = vadd.f32 %v951, %v957
        %v969 = vadd.f32 %v952, %v957
        %v970 = vadd.f32 %v953, %v957
        %v971 = vadd.f32 %v954, %v957
        %v972 = vadd.f32 %v955, %v957
        %v973 = vadd.f32 %v956, %v957
        %v974 = vmax.f32 %v958, 0.0
        %v975 = vmax.f32 %v959, 0.0
        %v976 = vmax.f32 %v960, 0.0
        %v977 = vmax.f32 %v961, 0.0
        %v978 = vmax.f32 %v962, 0.0
        %v979 = vmax.f32 %v963, 0.0
        %v980 = vmax.f32 %v964, 0.0
        %v981 = vmax.f32 %v965, 0.0
        %v982 = vmax.f32 %v966, 0.0
        %v983 = vmax.f32 %v967, 0.0
        %v984 = vmax.f32 %v968, 0.0
        %v985 = vmax.f32 %v969, 0.0
        %v986 = vmax.f32 %v970, 0.0
        %v987 = vmax.f32 %v971, 0.0
        %v988 = vmax.f32 %v972, 0.0
        %v989 = vmax.f32 %v973, 0.0
        %vm990 = vcmask 523264
        %991 = vst.msk [vmem:[%s215] sm:$0xff] %vm990, %v974
        %992 = vst.msk [vmem:[%s215 + $0x8] sm:$0xff] %vm990, %v975
        %993 = vst.msk [vmem:[%s215 + $0x10] sm:$0xff] %vm990, %v976
        %994 = vst.msk [vmem:[%s215 + $0x18] sm:$0xff] %vm990, %v977
        %995 = vst.msk [vmem:[%s215 + $0x20] sm:$0xff] %vm990, %v978
        %996 = vst.msk [vmem:[%s215 + $0x28] sm:$0xff] %vm990, %v979
        %997 = vst.msk [vmem:[%s215 + $0x30] sm:$0xff] %vm990, %v980
        %998 = vst.msk [vmem:[%s215 + $0x38] sm:$0xff] %vm990, %v981
        %999 = vst.msk [vmem:[%s215 + $0x40] sm:$0xff] %vm990, %v982
        %1000 = vst.msk [vmem:[%s215 + $0x48] sm:$0xff] %vm990, %v983
        %1001 = vst.msk [vmem:[%s215 + $0x50] sm:$0xff] %vm990, %v984
        %1002 = vst.msk [vmem:[%s215 + $0x58] sm:$0xff] %vm990, %v985
        %1003 = vst.msk [vmem:[%s215 + $0x60] sm:$0xff] %vm990, %v986
        %1004 = vst.msk [vmem:[%s215 + $0x68] sm:$0xff] %vm990, %v987
        %1005 = vst.msk [vmem:[%s215 + $0x70] sm:$0xff] %vm990, %v988
        %1006 = vst.msk [vmem:[%s215 + $0x78] sm:$0xff] %vm990, %v989
      $region48: #{g_block_forward.1} parent=35 // pred_fallthru
        _
      %s1007 = smul.u32 %s19, %s20
      %s1008 = smul.u32 16, %s1007
      %p1009 = scmp.lt.s32.totalorder %s1008, 31
      %s1010 = scalar_select %p1009, %s1008, 31
      %s1011 = smul.addr %s1010, 8
      %s1012 = scalar_lea.vmem %s4, %s1011
      // Predicated region
      $region49: #{g_block_forward.1} parent=35 // pred_check
        %p1013 = pneg %p136
      $region50: #{g_block_forward.1} parent=35 // pred_check_branch
        %1015 = sbr.rel (%p1013) target = $region52
      $region51: #{g_block_forward.1} parent=35 // pred_region
        %s1016 = smul.u32 %s19, %s20
        %s1017 = smul.u32 16, %s1016
      $region52: #{g_block_forward.1} parent=35 // pred_fallthru
        _
    $region36: #{g_block_forward.1} parent=5 // pred_fallthru
      _
    %p1018 = scmp.le.s32.totalorder 2, %s10
    // Predicated region
    $region53: #{g_block_forward.1} parent=5 // pred_check
      %p1019 = pneg %p1018
    $region54: #{g_block_forward.1} parent=5 // pred_check_branch
      %1021 = sbr.rel (%p1019) target = $region56
    $region55: #{g_block_forward.1} parent=5 // pred_region
      %s1022 = ssub.s32 %s10, 2
      // Predicated region
      $region57: #{g_block_forward.1} parent=55 // pred_check
        %p1023 = pneg %p142
      $region58: #{g_block_forward.1} parent=55 // pred_check_branch
        %1025 = sbr.rel (%p1023) target = $region60
      $region59: #{g_block_forward.1} parent=55 // pred_region
        %s1026 = smul.u32 %s21, %s22
        %s1027 = smul.u32 16, %s1026
        %p1028 = scmp.lt.s32.totalorder %s1027, 31
        %s1029 = scalar_select %p1028, %s1027, 31
        %s1030 = smul.addr %s1029, 8
        %s1031 = scalar_lea.vmem %s4, %s1030
      $region60: #{g_block_forward.1} parent=55 // pred_fallthru
        _
    $region56: #{g_block_forward.1} parent=5 // pred_fallthru
      _
  $region6: #{g_block_forward.1} parent=0 // loop_footer
    %s14 = sadd.s32 1, %s10
  $region7: #{g_block_forward.1} parent=0 // loop_footer_branch
    %9 = sbr.rel target = $region3
  $region8: #{g_block_forward.1} parent=0 // loop_exit
    _

</llo_original>
